<compile_context>
chip_gen: v5e
topology: v5e:2x2
jax: 0.10.0
libtpu: 0.0.40
codegen_flags: <defaults>
</compile_context>

<pallas_src>
import math
import jax
import jax.numpy as jnp
from jax.experimental import pallas as pl
from jax.experimental.pallas import tpu as pltpu

INPUT_SIZE = 9
HIDDEN_SIZE = 81 * 2            # 162 (logical)
OUT_SIZE = HIDDEN_SIZE // 2     # 81  (logical)

HIDDEN_PAD = 256                # lane-aligned hidden width used inside kernel
OUT_PAD = 128                   # lane-aligned output width used inside kernel


def _control_kernel(x_ref, w1t_ref, wznt_ref, w2t_ref, o_ref):
    """Forward pass for one batch tile (all operands resident in VMEM).

    x_ref    : (bb, 9)               input tile, f32
    w1t_ref  : (9, HIDDEN_PAD)       first Linear, transposed + padded, bf16
    wznt_ref : (HIDDEN_PAD, 2*HIDDEN_PAD)  fused [W_iz | W_in], transposed + padded, bf16
    w2t_ref  : (HIDDEN_PAD, OUT_PAD) final Linear, transposed + padded, bf16
    o_ref    : (bb, OUT_PAD)         output tile, f32 (cols >= 81 are zero)
    """
    x = x_ref[...].astype(jnp.bfloat16)

    # Linear(9 -> H, no bias) + Tanh.  Padded hidden columns are zero weights,
    # so padded activations are tanh(0) = 0.
    a = jnp.tanh(jnp.dot(x, w1t_ref[...], preferred_element_type=jnp.float32))
    a_bf = a.astype(jnp.bfloat16)

    # GRUCell(H -> H, no bias) with hx = 0, fused gate matmul:
    #   [z_logits | n_logits] = a @ [W_iz^T | W_in^T]
    #   z = sigmoid(z_logits),  n = tanh(n_logits),  h' = (1 - z) * n
    zn = jnp.dot(a_bf, wznt_ref[...], preferred_element_type=jnp.float32)
    z = jax.nn.sigmoid(zn[:, :HIDDEN_PAD])
    n = jnp.tanh(zn[:, HIDDEN_PAD:])
    h_new = (1.0 - z) * n         # padded cols: (1-0.5)*0 = 0; killed by zero w2t rows anyway

    # Linear(H -> OUT, no bias), lane-dense (OUT_PAD = 128) store.
    o_ref[...] = jnp.dot(
        h_new.astype(jnp.bfloat16), w2t_ref[...],
        preferred_element_type=jnp.float32).astype(o_ref.dtype)


def prepare_params(params, dtype=jnp.bfloat16):
    """One-time weight prep: slice GRU gates, fuse z/n, transpose, zero-pad to
    lane-aligned shapes, cast to bf16.  W_hh and W_ir are dropped (dead, h=0)."""
    H, HP = HIDDEN_SIZE, HIDDEN_PAD
    OUT, OUTP = OUT_SIZE, OUT_PAD
    w_ih = params["w_ih"]                      # PyTorch row order: [reset; update; new]
    wz = w_ih[1 * H:2 * H, :]                  # (H, H) update gate
    wn = w_ih[2 * H:3 * H, :]                  # (H, H) candidate

    w1t = jnp.zeros((INPUT_SIZE, HP), jnp.float32).at[:, :H].set(params["w1"].T)

    wznt = jnp.zeros((HP, 2 * HP), jnp.float32)
    wznt = wznt.at[:H, :H].set(wz.T)           # z logits in cols [0, H)
    wznt = wznt.at[:H, HP:HP + H].set(wn.T)    # n logits in cols [HP, HP+H)

    w2t = jnp.zeros((HP, OUTP), jnp.float32).at[:H, :OUT].set(params["w2"].T)

    return {
        "w1t": w1t.astype(dtype),              # (9, 256)
        "wznt": wznt.astype(dtype),            # (256, 512)
        "w2t": w2t.astype(dtype),              # (256, 128)
    }


def _round_up(n, m):
    return ((n + m - 1) // m) * m


def control_forward(x, prepped, *, block_b=2048):
    """x: (B, INPUT_SIZE) float32 -> (B, OUT_SIZE) float32."""
    B = x.shape[0]
    if B <= 256:
        # Tiny batch: single grid step, pure latency floor.
        bb = B
    else:
        # Large batch: big tiles to amortize ~0.35 us/step overhead, but at
        # least 2 grid steps so the "parallel" axis can shard across v7x's
        # two TensorCores.  Per-row VMEM is tiny, so bb=2048 is comfortable
        # on all generations (incl. v7x's 64 MiB).
        bb = min(block_b, _round_up(pl.cdiv(B, 2), 8))
    grid = (pl.cdiv(B, bb),)

    # Weights use constant index_maps so they stay VMEM-resident across batch
    # tiles (each TC holds its own copy on megacore).
    w_spec = lambda shape: pl.BlockSpec(shape, lambda i: (0, 0))

    out_pad = pl.pallas_call(
        _control_kernel,
        out_shape=jax.ShapeDtypeStruct((B, OUT_PAD), jnp.float32),
        grid=grid,
        in_specs=[
            pl.BlockSpec((bb, INPUT_SIZE), lambda i: (i, 0)),
            w_spec((INPUT_SIZE, HIDDEN_PAD)),
            w_spec((HIDDEN_PAD, 2 * HIDDEN_PAD)),
            w_spec((HIDDEN_PAD, OUT_PAD)),
        ],
        out_specs=pl.BlockSpec((bb, OUT_PAD), lambda i: (i, 0)),
        compiler_params=pltpu.CompilerParams(
            dimension_semantics=("parallel",)),
    )(x, prepped["w1t"], prepped["wznt"], prepped["w2t"])

    # Drop the lane padding (81 real output columns).
    return out_pad[:, :OUT_SIZE]


def init_params(key):
    """Deterministic init mimicking PyTorch default U(-1/sqrt(fan_in), +...)."""
    ks = jax.random.split(key, 4)

    def uni(k, shape, fan_in):
        b = 1.0 / math.sqrt(fan_in)
        return jax.random.uniform(k, shape, jnp.float32, -b, b)

    return {
        "w1":   uni(ks[0], (HIDDEN_SIZE, INPUT_SIZE), INPUT_SIZE),        # Linear 1
        "w_ih": uni(ks[1], (3 * HIDDEN_SIZE, HIDDEN_SIZE), HIDDEN_SIZE),  # GRU ih
        "w_hh": uni(ks[2], (3 * HIDDEN_SIZE, HIDDEN_SIZE), HIDDEN_SIZE),  # GRU hh (dead: h=0)
        "w2":   uni(ks[3], (OUT_SIZE, HIDDEN_SIZE), HIDDEN_SIZE),         # Linear 2
    }


def _reference(x, params):
    """Pure-JAX f32 reference of the FULL GRU forward pass (hx = zeros)."""
    H = HIDDEN_SIZE
    h = jnp.zeros((x.shape[0], H), jnp.float32)
    a = jnp.tanh(x @ params["w1"].T)
    gi = a @ params["w_ih"].T
    gh = h @ params["w_hh"].T
    r = jax.nn.sigmoid(gi[:, :H] + gh[:, :H])
    z = jax.nn.sigmoid(gi[:, H:2 * H] + gh[:, H:2 * H])
    n = jnp.tanh(gi[:, 2 * H:] + r * gh[:, 2 * H:])
    h_new = (1.0 - z) * n + z * h
    return h_new @ params["w2"].T


if __name__ == "__main__":
    key = jax.random.PRNGKey(0)
    k_param, k_x = jax.random.split(key)

    B = 8
    x = jax.random.normal(k_x, (B, INPUT_SIZE), jnp.float32)
    params = init_params(k_param)
    prepped = prepare_params(params)   # one-time weight prep (slice/fuse/pad/T/bf16)

    out = control_forward(x, prepped)
    jax.block_until_ready(out)

    ref = _reference(x, params)
    assert out.shape == (B, OUT_SIZE)
    # Tolerance loosened vs an f32-only version because weights/activations
    # feeding the MXU are bf16 (accumulation still f32).
    assert jnp.allclose(out, ref, atol=3e-2, rtol=3e-2), "mismatch vs reference"

    print("KERNEL_OK")
</pallas_src>

<mosaic_0001>
module attributes {stable_mosaic.version = 11 : i64} {
  func.func @_control_kernel(%arg0: i32, %arg1: memref<8x9xf32, #tpu.memory_space<vmem>>, %arg2: memref<9x256xbf16, #tpu.memory_space<vmem>>, %arg3: memref<256x512xbf16, #tpu.memory_space<vmem>>, %arg4: memref<256x128xbf16, #tpu.memory_space<vmem>>, %arg5: memref<8x128xf32, #tpu.memory_space<vmem>>) attributes {dimension_semantics = [#tpu.dimension_semantics<parallel>], iteration_bounds = array<i64: 1>, scalar_prefetch = 0 : i64, scratch_operands = 0 : i64, tpu.core_type = #tpu.core_type<tc>, window_params = [{transform_indices = @transform_0, window_bounds = array<i64: 8, 9>}, {pipeline_mode = #tpu.pipeline_mode<synchronous>, transform_indices = @transform_1, window_bounds = array<i64: 9, 256>}, {pipeline_mode = #tpu.pipeline_mode<synchronous>, transform_indices = @transform_2, window_bounds = array<i64: 256, 512>}, {pipeline_mode = #tpu.pipeline_mode<synchronous>, transform_indices = @transform_3, window_bounds = array<i64: 256, 128>}, {transform_indices = @transform_4, window_bounds = array<i64: 8, 128>}]} {
    %c0 = arith.constant 0 : index
    %c0_0 = arith.constant 0 : index
    %0 = vector.load %arg1[%c0, %c0_0] : memref<8x9xf32, #tpu.memory_space<vmem>>, vector<8x9xf32>
    %1 = arith.truncf %0 : vector<8x9xf32> to vector<8x9xbf16>
    %c0_1 = arith.constant 0 : index
    %c0_2 = arith.constant 0 : index
    %2 = vector.load %arg2[%c0_1, %c0_2] : memref<9x256xbf16, #tpu.memory_space<vmem>>, vector<9x256xbf16>
    %cst = arith.constant dense<0.000000e+00> : vector<8x256xf32>
    %3 = tpu.matmul %1, %2, %cst {dimension_numbers = #tpu.dot_dimension_numbers<[1], [0], [0], [1], [0, 0, 1, 1], [], []>} : vector<8x9xbf16>, vector<9x256xbf16>, vector<8x256xf32> -> vector<8x256xf32>
    %4 = math.tanh %3 : vector<8x256xf32>
    %5 = arith.truncf %4 : vector<8x256xf32> to vector<8x256xbf16>
    %c0_3 = arith.constant 0 : index
    %c0_4 = arith.constant 0 : index
    %6 = vector.load %arg3[%c0_3, %c0_4] : memref<256x512xbf16, #tpu.memory_space<vmem>>, vector<256x512xbf16>
    %cst_5 = arith.constant dense<0.000000e+00> : vector<8x512xf32>
    %7 = tpu.matmul %5, %6, %cst_5 {dimension_numbers = #tpu.dot_dimension_numbers<[1], [0], [0], [1], [0, 0, 1, 1], [], []>} : vector<8x256xbf16>, vector<256x512xbf16>, vector<8x512xf32> -> vector<8x512xf32>
    %8 = vector.extract_strided_slice %7 {offsets = [0, 0], sizes = [8, 256], strides = [1, 1]} : vector<8x512xf32> to vector<8x256xf32>
    %9 = arith.negf %8 : vector<8x256xf32>
    %10 = math.exp %9 : vector<8x256xf32>
    %cst_6 = arith.constant 1.000000e+00 : f32
    %11 = vector.broadcast %cst_6 : f32 to vector<8x256xf32>
    %12 = arith.addf %11, %10 : vector<8x256xf32>
    %13 = arith.divf %11, %12 : vector<8x256xf32>
    %14 = vector.extract_strided_slice %7 {offsets = [0, 256], sizes = [8, 256], strides = [1, 1]} : vector<8x512xf32> to vector<8x256xf32>
    %15 = math.tanh %14 : vector<8x256xf32>
    %cst_7 = arith.constant 1.000000e+00 : f32
    %16 = vector.broadcast %cst_7 : f32 to vector<8x256xf32>
    %17 = arith.subf %16, %13 : vector<8x256xf32>
    %18 = arith.mulf %17, %15 : vector<8x256xf32>
    %19 = arith.truncf %18 : vector<8x256xf32> to vector<8x256xbf16>
    %c0_8 = arith.constant 0 : index
    %c0_9 = arith.constant 0 : index
    %20 = vector.load %arg4[%c0_8, %c0_9] : memref<256x128xbf16, #tpu.memory_space<vmem>>, vector<256x128xbf16>
    %cst_10 = arith.constant dense<0.000000e+00> : vector<8x128xf32>
    %21 = tpu.matmul %19, %20, %cst_10 {dimension_numbers = #tpu.dot_dimension_numbers<[1], [0], [0], [1], [0, 0, 1, 1], [], []>} : vector<8x256xbf16>, vector<256x128xbf16>, vector<8x128xf32> -> vector<8x128xf32>
    %c0_11 = arith.constant 0 : index
    %c0_12 = arith.constant 0 : index
    %22 = vector.load %arg5[%c0_11, %c0_12] : memref<8x128xf32, #tpu.memory_space<vmem>>, vector<8x128xf32>
    tpu.vector_store %arg5[%c0_11, %c0_12], %21 {strides = array<i32>} : memref<8x128xf32, #tpu.memory_space<vmem>>, vector<8x128xf32>,
    return
  }
  func.func @transform_0(%arg0: i32) -> (i32, i32) {
    %c0_i32 = arith.constant 0 : i32
    %c0_i32_0 = arith.constant 0 : i32
    return %arg0, %c0_i32 : i32, i32
  }
  func.func @transform_1(%arg0: i32) -> (i32, i32) {
    %c0_i32 = arith.constant 0 : i32
    %c0_i32_0 = arith.constant 0 : i32
    %c0_i32_1 = arith.constant 0 : i32
    return %c0_i32, %c0_i32_0 : i32, i32
  }
  func.func @transform_2(%arg0: i32) -> (i32, i32) {
    %c0_i32 = arith.constant 0 : i32
    %c0_i32_0 = arith.constant 0 : i32
    %c0_i32_1 = arith.constant 0 : i32
    return %c0_i32, %c0_i32_0 : i32, i32
  }
  func.func @transform_3(%arg0: i32) -> (i32, i32) {
    %c0_i32 = arith.constant 0 : i32
    %c0_i32_0 = arith.constant 0 : i32
    %c0_i32_1 = arith.constant 0 : i32
    return %c0_i32, %c0_i32_0 : i32, i32
  }
  func.func @transform_4(%arg0: i32) -> (i32, i32) {
    %c0_i32 = arith.constant 0 : i32
    %c0_i32_0 = arith.constant 0 : i32
    return %arg0, %c0_i32 : i32, i32
  }
}

</mosaic_0001>

<llo_original>
// kernel: tpu_custom_call.1
$region0: #{tpu_custom_call.1}
  #allocation0 [shape = 'u32[]', space=smem, size = 0x4, offset = 0x4, fixed_abs, tag = 'smem constant byte address 0x4 - core index']
  #allocation1 [shape = 'u32[72,128]{1,0:T(1,128)}', space=vmem, size = 0x9000, scoped, tag = 'internal scratch']
  %s0 = inlined_call_operand.hbm [shape: f32[8,9], index: 0, kind: input, shape index: {}]
  %s1 = inlined_call_operand.hbm [shape: bf16[9,256], index: 1, kind: input, shape index: {}]
  %s2 = inlined_call_operand.hbm [shape: bf16[256,512], index: 2, kind: input, shape index: {}]
  %s3 = inlined_call_operand.hbm [shape: bf16[256,128], index: 3, kind: input, shape index: {}]
  %s4 = inlined_call_operand.hbm [shape: f32[8,128], index: 4, kind: output, shape index: {}]
  %s5 = sld [smem:[#allocation0]]
  $region42: #{tpu_custom_call.1} parent=0
    _
  %s7 = ssub.s32 1, %s5
  %s8 = scalar_select 0, %s7, %s5
  $region1: #{tpu_custom_call.1} parent=0
    #allocation2 [shape = 'u8[4096]{0}', space=vmem, size = 0x1000, scoped, tag = 'input window, operand 0, single buffered']
    #allocation3 [shape = 's32[1]{0}', space=sflag, size = 0x4, scoped, tag = 'scoped memory for tpu_custom_call.1']
    #allocation4 [shape = 's32[1]{0}', space=sflag, size = 0x4, scoped, tag = 'scoped memory for tpu_custom_call.1']
    #allocation5 [shape = 'u8[8192]{0}', space=vmem, size = 0x2000, scoped, tag = 'input window, operand 1, single buffered']
    #allocation6 [shape = 's32[1]{0}', space=sflag, size = 0x4, scoped, tag = 'scoped memory for tpu_custom_call.1']
    #allocation7 [shape = 'u8[262144]{0}', space=vmem, size = 0x40000, scoped, tag = 'input window, operand 2, single buffered']
    #allocation8 [shape = 'u8[65536]{0}', space=vmem, size = 0x10000, scoped, tag = 'input window, operand 3, single buffered']
    #allocation9 [shape = 's32[1]{0}', space=sflag, size = 0x4, scoped, tag = 'scoped memory for tpu_custom_call.1']
    #allocation10 [shape = 'u8[4096]{0}', space=vmem, size = 0x1000, scoped, tag = 'output window, operand 0, single buffered']
    %9 = vsyncpa [#allocation3], 0
    %10 = vsyncpa [#allocation6], 0
    %11 = vsyncpa [#allocation9], 0
    %12 = vsyncpa [#allocation4], 0
    // Predicated region
    $region2: #{tpu_custom_call.1} parent=1 // pred_check
      _
    $region3: #{tpu_custom_call.1} parent=1 // pred_check_branch
      %14 = sbr.rel (0) target = $region5
    $region4: #{tpu_custom_call.1} parent=1 // pred_region
      %16 = vsyncadd [#allocation3], 0
      %s18 = sshll.u32 %s0, 4
      %s19 = int_to_ptr.hbm [resolvable:$true] %s18
      %s20 = sshll.u32 [#allocation2], 4
      %s21 = int_to_ptr.vmem [resolvable:$true] %s20
      %23 = dma.hbm_to_vmem [thread:$0]  %s19, 128, %s21, [#allocation3]
    $region5: #{tpu_custom_call.1} parent=1 // pred_fallthru
      _
    // Predicated region
    $region6: #{tpu_custom_call.1} parent=1 // pred_check
      _
    $region7: #{tpu_custom_call.1} parent=1 // pred_check_branch
      %25 = sbr.rel (0) target = $region9
    $region8: #{tpu_custom_call.1} parent=1 // pred_region
      %27 = vsyncadd [#allocation6], 0
      %s28 = sshll.u32 %s1, 4
      %s29 = int_to_ptr.hbm [resolvable:$true] %s28
      %s30 = sshll.u32 [#allocation5], 4
      %s31 = int_to_ptr.vmem [resolvable:$true] %s30
      %36 = dma.hbm_to_vmem [thread:$0]  %s29, 256, %s31, [#allocation6], 128, 128, 8
    $region9: #{tpu_custom_call.1} parent=1 // pred_fallthru
      _
    // Predicated region
    $region10: #{tpu_custom_call.1} parent=1 // pred_check
      _
    $region11: #{tpu_custom_call.1} parent=1 // pred_check_branch
      %38 = sbr.rel (0) target = $region13
    $region12: #{tpu_custom_call.1} parent=1 // pred_region
      %40 = vsyncadd [#allocation6], 0
      %s41 = sshll.u32 %s2, 4
      %s42 = int_to_ptr.hbm [resolvable:$true] %s41
      %s43 = sshll.u32 [#allocation7], 4
      %s44 = int_to_ptr.vmem [resolvable:$true] %s43
      %49 = dma.hbm_to_vmem [thread:$0]  %s42, 8192, %s44, [#allocation6], 256, 256, 16
    $region13: #{tpu_custom_call.1} parent=1 // pred_fallthru
      _
    // Predicated region
    $region14: #{tpu_custom_call.1} parent=1 // pred_check
      _
    $region15: #{tpu_custom_call.1} parent=1 // pred_check_branch
      %51 = sbr.rel (0) target = $region17
    $region16: #{tpu_custom_call.1} parent=1 // pred_region
      %53 = vsyncadd [#allocation9], 0
      %s54 = sshll.u32 %s3, 4
      %s55 = int_to_ptr.hbm [resolvable:$true] %s54
      %s56 = sshll.u32 [#allocation8], 4
      %s57 = int_to_ptr.vmem [resolvable:$true] %s56
      %62 = dma.hbm_to_vmem [thread:$0]  %s55, 2048, %s57, [#allocation9], 64, 64, 4
    $region17: #{tpu_custom_call.1} parent=1 // pred_fallthru
      _
    // Predicated region
    $region18: #{tpu_custom_call.1} parent=1 // pred_check
      _
    $region19: #{tpu_custom_call.1} parent=1 // pred_check_branch
      %64 = sbr.rel (0) target = $region21
    $region20: #{tpu_custom_call.1} parent=1 // pred_region
      %66 = dma.done [#allocation3], 128
    $region21: #{tpu_custom_call.1} parent=1 // pred_fallthru
      _
    // Predicated region
    $region22: #{tpu_custom_call.1} parent=1 // pred_check
      _
    $region23: #{tpu_custom_call.1} parent=1 // pred_check_branch
      %68 = sbr.rel (0) target = $region25
    $region24: #{tpu_custom_call.1} parent=1 // pred_region
      %70 = dma.done [#allocation6], 256
    $region25: #{tpu_custom_call.1} parent=1 // pred_fallthru
      _
    // Predicated region
    $region26: #{tpu_custom_call.1} parent=1 // pred_check
      _
    $region27: #{tpu_custom_call.1} parent=1 // pred_check_branch
      %72 = sbr.rel (0) target = $region29
    $region28: #{tpu_custom_call.1} parent=1 // pred_region
      %74 = dma.done [#allocation6], 8192
    $region29: #{tpu_custom_call.1} parent=1 // pred_fallthru
      _
    // Predicated region
    $region30: #{tpu_custom_call.1} parent=1 // pred_check
      _
    $region31: #{tpu_custom_call.1} parent=1 // pred_check_branch
      %76 = sbr.rel (0) target = $region33
    $region32: #{tpu_custom_call.1} parent=1 // pred_region
      %78 = dma.done [#allocation9], 2048
    $region33: #{tpu_custom_call.1} parent=1 // pred_fallthru
      _
    %v80 = vld [vmem:[#allocation2] sm:$0xff]
    %v81 = vpack.c.bf16 %v80, %v80
    %v82 = vld [vmem:[#allocation5] sm:$0xff]
    %v83 = vld [vmem:[#allocation5 + $0x8] sm:$0x11]
    %v86 = vunpack.c.l.b16 %v82
    %v87 = vunpack.c.h.b16 %v82
    %v88 = vunpack.c.l.b16 %v83
    %v89 = vunpack.c.h.b16 %v83
    %v90 = vpack.c.b16 %v88, %v86
    %v91 = vpack.c.b16 %v89, %v87
    %vm92 = vcmask 72704
    %v94 = vsel %vm92, %v81, 0
    %vm96 = vcmask 1043456
    %vm97 = vcmask 1044480
    %v98 = vsel %vm96, 4294967295, 65535
    %v99 = vsel %vm97, %v98, 0
    %v101 = vand.u32 %v90, %v99
    %v104 = vand.u32 %v91, %v99
    %106 = vmatpush.bf16.msra.mxu0 0
    %107 = vmatpush.bf16.msra.mxu0 0
    %108 = vmatpush.bf16.msra.mxu0 0
    %109 = vmatpush.bf16.msra.mxu0 0
    %110 = vmatpush.bf16.msra.mxu0 0
    %111 = vmatpush.bf16.msra.mxu0 0
    %112 = vmatpush.bf16.msra.mxu0 0
    %113 = vmatpush.bf16.msra.mxu0 %v101
    %114 = vmatmul.bf16.gmra.mxu0 %v94
    %v115 = vpop.f32.mrf.mxu0
    %v116 = vadd.f32 0.0, %v115
    %v117 = vpop.f32.mrf.mxu0
    %118 = vdwg.mxu0
    %119 = vmatpush.bf16.msra.mxu0 0
    %120 = vmatpush.bf16.msra.mxu0 0
    %121 = vmatpush.bf16.msra.mxu0 0
    %122 = vmatpush.bf16.msra.mxu0 0
    %123 = vmatpush.bf16.msra.mxu0 0
    %124 = vmatpush.bf16.msra.mxu0 0
    %125 = vmatpush.bf16.msra.mxu0 0
    %126 = vmatpush.bf16.msra.mxu0 %v104
    %127 = vmatmul.bf16.gmra.mxu0 %v94
    %v128 = vpop.f32.mrf.mxu0
    %v129 = vadd.f32 0.0, %v128
    %v130 = vpop.f32.mrf.mxu0
    %131 = vdwg.mxu0
    %v132 = vtanh.pop %v116
    %v133 = vtanh.pop %v129
    %v134 = vpack.c.bf16 %v132, %v132
    %v135 = vpack.c.bf16 %v133, %v133
    %v136 = vld [vmem:[#allocation7] sm:$0xff]
    %v137 = vld [vmem:[#allocation7 + $0x8] sm:$0xff]
    %v138 = vld [vmem:[#allocation7 + $0x10] sm:$0xff]
    %v139 = vld [vmem:[#allocation7 + $0x18] sm:$0xff]
    %v140 = vld [vmem:[#allocation7 + $0x20] sm:$0xff]
    %v141 = vld [vmem:[#allocation7 + $0x28] sm:$0xff]
    %v142 = vld [vmem:[#allocation7 + $0x30] sm:$0xff]
    %v143 = vld [vmem:[#allocation7 + $0x38] sm:$0xff]
    %v144 = vld [vmem:[#allocation7 + $0x40] sm:$0xff]
    %v145 = vld [vmem:[#allocation7 + $0x48] sm:$0xff]
    %v146 = vld [vmem:[#allocation7 + $0x50] sm:$0xff]
    %v147 = vld [vmem:[#allocation7 + $0x58] sm:$0xff]
    %v148 = vld [vmem:[#allocation7 + $0x60] sm:$0xff]
    %v149 = vld [vmem:[#allocation7 + $0x68] sm:$0xff]
    %v150 = vld [vmem:[#allocation7 + $0x70] sm:$0xff]
    %v151 = vld [vmem:[#allocation7 + $0x78] sm:$0xff]
    %v152 = vld [vmem:[#allocation7 + $0x80] sm:$0xff]
    %v153 = vld [vmem:[#allocation7 + $0x88] sm:$0xff]
    %v154 = vld [vmem:[#allocation7 + $0x90] sm:$0xff]
    %v155 = vld [vmem:[#allocation7 + $0x98] sm:$0xff]
    %v156 = vld [vmem:[#allocation7 + $0xa0] sm:$0xff]
    %v157 = vld [vmem:[#allocation7 + $0xa8] sm:$0xff]
    %v158 = vld [vmem:[#allocation7 + $0xb0] sm:$0xff]
    %v159 = vld [vmem:[#allocation7 + $0xb8] sm:$0xff]
    %v160 = vld [vmem:[#allocation7 + $0xc0] sm:$0xff]
    %v161 = vld [vmem:[#allocation7 + $0xc8] sm:$0xff]
    %v162 = vld [vmem:[#allocation7 + $0xd0] sm:$0xff]
    %v163 = vld [vmem:[#allocation7 + $0xd8] sm:$0xff]
    %v164 = vld [vmem:[#allocation7 + $0xe0] sm:$0xff]
    %v165 = vld [vmem:[#allocation7 + $0xe8] sm:$0xff]
    %v166 = vld [vmem:[#allocation7 + $0xf0] sm:$0xff]
    %v167 = vld [vmem:[#allocation7 + $0xf8] sm:$0xff]
    %v168 = vld [vmem:[#allocation7 + $0x100] sm:$0xff]
    %v169 = vld [vmem:[#allocation7 + $0x108] sm:$0xff]
    %v170 = vld [vmem:[#allocation7 + $0x110] sm:$0xff]
    %v171 = vld [vmem:[#allocation7 + $0x118] sm:$0xff]
    %v172 = vld [vmem:[#allocation7 + $0x120] sm:$0xff]
    %v173 = vld [vmem:[#allocation7 + $0x128] sm:$0xff]
    %v174 = vld [vmem:[#allocation7 + $0x130] sm:$0xff]
    %v175 = vld [vmem:[#allocation7 + $0x138] sm:$0xff]
    %v176 = vld [vmem:[#allocation7 + $0x140] sm:$0xff]
    %v177 = vld [vmem:[#allocation7 + $0x148] sm:$0xff]
    %v178 = vld [vmem:[#allocation7 + $0x150] sm:$0xff]
    %v179 = vld [vmem:[#allocation7 + $0x158] sm:$0xff]
    %v180 = vld [vmem:[#allocation7 + $0x160] sm:$0xff]
    %v181 = vld [vmem:[#allocation7 + $0x168] sm:$0xff]
    %v182 = vld [vmem:[#allocation7 + $0x170] sm:$0xff]
    %v183 = vld [vmem:[#allocation7 + $0x178] sm:$0xff]
    %v184 = vld [vmem:[#allocation7 + $0x180] sm:$0xff]
    %v185 = vld [vmem:[#allocation7 + $0x188] sm:$0xff]
    %v186 = vld [vmem:[#allocation7 + $0x190] sm:$0xff]
    %v187 = vld [vmem:[#allocation7 + $0x198] sm:$0xff]
    %v188 = vld [vmem:[#allocation7 + $0x1a0] sm:$0xff]
    %v189 = vld [vmem:[#allocation7 + $0x1a8] sm:$0xff]
    %v190 = vld [vmem:[#allocation7 + $0x1b0] sm:$0xff]
    %v191 = vld [vmem:[#allocation7 + $0x1b8] sm:$0xff]
    %v192 = vld [vmem:[#allocation7 + $0x1c0] sm:$0xff]
    %v193 = vld [vmem:[#allocation7 + $0x1c8] sm:$0xff]
    %v194 = vld [vmem:[#allocation7 + $0x1d0] sm:$0xff]
    %v195 = vld [vmem:[#allocation7 + $0x1d8] sm:$0xff]
    %v196 = vld [vmem:[#allocation7 + $0x1e0] sm:$0xff]
    %v197 = vld [vmem:[#allocation7 + $0x1e8] sm:$0xff]
    %v198 = vld [vmem:[#allocation7 + $0x1f0] sm:$0xff]
    %v199 = vld [vmem:[#allocation7 + $0x1f8] sm:$0xff]
    %v264 = vunpack.c.l.b16 %v136
    %v265 = vunpack.c.h.b16 %v136
    %v266 = vunpack.c.l.b16 %v137
    %v267 = vunpack.c.h.b16 %v137
    %v268 = vunpack.c.l.b16 %v138
    %v269 = vunpack.c.h.b16 %v138
    %v270 = vunpack.c.l.b16 %v139
    %v271 = vunpack.c.h.b16 %v139
    %v272 = vunpack.c.l.b16 %v140
    %v273 = vunpack.c.h.b16 %v140
    %v274 = vunpack.c.l.b16 %v141
    %v275 = vunpack.c.h.b16 %v141
    %v276 = vunpack.c.l.b16 %v142
    %v277 = vunpack.c.h.b16 %v142
    %v278 = vunpack.c.l.b16 %v143
    %v279 = vunpack.c.h.b16 %v143
    %v280 = vunpack.c.l.b16 %v144
    %v281 = vunpack.c.h.b16 %v144
    %v282 = vunpack.c.l.b16 %v145
    %v283 = vunpack.c.h.b16 %v145
    %v284 = vunpack.c.l.b16 %v146
    %v285 = vunpack.c.h.b16 %v146
    %v286 = vunpack.c.l.b16 %v147
    %v287 = vunpack.c.h.b16 %v147
    %v288 = vunpack.c.l.b16 %v148
    %v289 = vunpack.c.h.b16 %v148
    %v290 = vunpack.c.l.b16 %v149
    %v291 = vunpack.c.h.b16 %v149
    %v292 = vunpack.c.l.b16 %v150
    %v293 = vunpack.c.h.b16 %v150
    %v294 = vunpack.c.l.b16 %v151
    %v295 = vunpack.c.h.b16 %v151
    %v296 = vunpack.c.l.b16 %v152
    %v297 = vunpack.c.h.b16 %v152
    %v298 = vunpack.c.l.b16 %v153
    %v299 = vunpack.c.h.b16 %v153
    %v300 = vunpack.c.l.b16 %v154
    %v301 = vunpack.c.h.b16 %v154
    %v302 = vunpack.c.l.b16 %v155
    %v303 = vunpack.c.h.b16 %v155
    %v304 = vunpack.c.l.b16 %v156
    %v305 = vunpack.c.h.b16 %v156
    %v306 = vunpack.c.l.b16 %v157
    %v307 = vunpack.c.h.b16 %v157
    %v308 = vunpack.c.l.b16 %v158
    %v309 = vunpack.c.h.b16 %v158
    %v310 = vunpack.c.l.b16 %v159
    %v311 = vunpack.c.h.b16 %v159
    %v312 = vunpack.c.l.b16 %v160
    %v313 = vunpack.c.h.b16 %v160
    %v314 = vunpack.c.l.b16 %v161
    %v315 = vunpack.c.h.b16 %v161
    %v316 = vunpack.c.l.b16 %v162
    %v317 = vunpack.c.h.b16 %v162
    %v318 = vunpack.c.l.b16 %v163
    %v319 = vunpack.c.h.b16 %v163
    %v320 = vunpack.c.l.b16 %v164
    %v321 = vunpack.c.h.b16 %v164
    %v322 = vunpack.c.l.b16 %v165
    %v323 = vunpack.c.h.b16 %v165
    %v324 = vunpack.c.l.b16 %v166
    %v325 = vunpack.c.h.b16 %v166
    %v326 = vunpack.c.l.b16 %v167
    %v327 = vunpack.c.h.b16 %v167
    %v328 = vunpack.c.l.b16 %v168
    %v329 = vunpack.c.h.b16 %v168
    %v330 = vunpack.c.l.b16 %v169
    %v331 = vunpack.c.h.b16 %v169
    %v332 = vunpack.c.l.b16 %v170
    %v333 = vunpack.c.h.b16 %v170
    %v334 = vunpack.c.l.b16 %v171
    %v335 = vunpack.c.h.b16 %v171
    %v336 = vunpack.c.l.b16 %v172
    %v337 = vunpack.c.h.b16 %v172
    %v338 = vunpack.c.l.b16 %v173
    %v339 = vunpack.c.h.b16 %v173
    %v340 = vunpack.c.l.b16 %v174
    %v341 = vunpack.c.h.b16 %v174
    %v342 = vunpack.c.l.b16 %v175
    %v343 = vunpack.c.h.b16 %v175
    %v344 = vunpack.c.l.b16 %v176
    %v345 = vunpack.c.h.b16 %v176
    %v346 = vunpack.c.l.b16 %v177
    %v347 = vunpack.c.h.b16 %v177
    %v348 = vunpack.c.l.b16 %v178
    %v349 = vunpack.c.h.b16 %v178
    %v350 = vunpack.c.l.b16 %v179
    %v351 = vunpack.c.h.b16 %v179
    %v352 = vunpack.c.l.b16 %v180
    %v353 = vunpack.c.h.b16 %v180
    %v354 = vunpack.c.l.b16 %v181
    %v355 = vunpack.c.h.b16 %v181
    %v356 = vunpack.c.l.b16 %v182
    %v357 = vunpack.c.h.b16 %v182
    %v358 = vunpack.c.l.b16 %v183
    %v359 = vunpack.c.h.b16 %v183
    %v360 = vunpack.c.l.b16 %v184
    %v361 = vunpack.c.h.b16 %v184
    %v362 = vunpack.c.l.b16 %v185
    %v363 = vunpack.c.h.b16 %v185
    %v364 = vunpack.c.l.b16 %v186
    %v365 = vunpack.c.h.b16 %v186
    %v366 = vunpack.c.l.b16 %v187
    %v367 = vunpack.c.h.b16 %v187
    %v368 = vunpack.c.l.b16 %v188
    %v369 = vunpack.c.h.b16 %v188
    %v370 = vunpack.c.l.b16 %v189
    %v371 = vunpack.c.h.b16 %v189
    %v372 = vunpack.c.l.b16 %v190
    %v373 = vunpack.c.h.b16 %v190
    %v374 = vunpack.c.l.b16 %v191
    %v375 = vunpack.c.h.b16 %v191
    %v376 = vunpack.c.l.b16 %v192
    %v377 = vunpack.c.h.b16 %v192
    %v378 = vunpack.c.l.b16 %v193
    %v379 = vunpack.c.h.b16 %v193
    %v380 = vunpack.c.l.b16 %v194
    %v381 = vunpack.c.h.b16 %v194
    %v382 = vunpack.c.l.b16 %v195
    %v383 = vunpack.c.h.b16 %v195
    %v384 = vunpack.c.l.b16 %v196
    %v385 = vunpack.c.h.b16 %v196
    %v386 = vunpack.c.l.b16 %v197
    %v387 = vunpack.c.h.b16 %v197
    %v388 = vunpack.c.l.b16 %v198
    %v389 = vunpack.c.h.b16 %v198
    %v390 = vunpack.c.l.b16 %v199
    %v391 = vunpack.c.h.b16 %v199
    %v392 = vpack.c.b16 %v268, %v264
    %v393 = vpack.c.b16 %v269, %v265
    %v394 = vpack.c.b16 %v270, %v266
    %v395 = vpack.c.b16 %v271, %v267
    %v396 = vpack.c.b16 %v276, %v272
    %v397 = vpack.c.b16 %v277, %v273
    %v398 = vpack.c.b16 %v278, %v274
    %v399 = vpack.c.b16 %v279, %v275
    %v400 = vpack.c.b16 %v284, %v280
    %v401 = vpack.c.b16 %v285, %v281
    %v402 = vpack.c.b16 %v286, %v282
    %v403 = vpack.c.b16 %v287, %v283
    %v404 = vpack.c.b16 %v292, %v288
    %v405 = vpack.c.b16 %v293, %v289
    %v406 = vpack.c.b16 %v294, %v290
    %v407 = vpack.c.b16 %v295, %v291
    %v408 = vpack.c.b16 %v300, %v296
    %v409 = vpack.c.b16 %v301, %v297
    %v410 = vpack.c.b16 %v302, %v298
    %v411 = vpack.c.b16 %v303, %v299
    %v412 = vpack.c.b16 %v308, %v304
    %v413 = vpack.c.b16 %v309, %v305
    %v414 = vpack.c.b16 %v310, %v306
    %v415 = vpack.c.b16 %v311, %v307
    %v416 = vpack.c.b16 %v316, %v312
    %v417 = vpack.c.b16 %v317, %v313
    %v418 = vpack.c.b16 %v318, %v314
    %v419 = vpack.c.b16 %v319, %v315
    %v420 = vpack.c.b16 %v324, %v320
    %v421 = vpack.c.b16 %v325, %v321
    %v422 = vpack.c.b16 %v326, %v322
    %v423 = vpack.c.b16 %v327, %v323
    %v424 = vpack.c.b16 %v332, %v328
    %v425 = vpack.c.b16 %v333, %v329
    %v426 = vpack.c.b16 %v334, %v330
    %v427 = vpack.c.b16 %v335, %v331
    %v428 = vpack.c.b16 %v340, %v336
    %v429 = vpack.c.b16 %v341, %v337
    %v430 = vpack.c.b16 %v342, %v338
    %v431 = vpack.c.b16 %v343, %v339
    %v432 = vpack.c.b16 %v348, %v344
    %v433 = vpack.c.b16 %v349, %v345
    %v434 = vpack.c.b16 %v350, %v346
    %v435 = vpack.c.b16 %v351, %v347
    %v436 = vpack.c.b16 %v356, %v352
    %v437 = vpack.c.b16 %v357, %v353
    %v438 = vpack.c.b16 %v358, %v354
    %v439 = vpack.c.b16 %v359, %v355
    %v440 = vpack.c.b16 %v364, %v360
    %v441 = vpack.c.b16 %v365, %v361
    %v442 = vpack.c.b16 %v366, %v362
    %v443 = vpack.c.b16 %v367, %v363
    %v444 = vpack.c.b16 %v372, %v368
    %v445 = vpack.c.b16 %v373, %v369
    %v446 = vpack.c.b16 %v374, %v370
    %v447 = vpack.c.b16 %v375, %v371
    %v448 = vpack.c.b16 %v380, %v376
    %v449 = vpack.c.b16 %v381, %v377
    %v450 = vpack.c.b16 %v382, %v378
    %v451 = vpack.c.b16 %v383, %v379
    %v452 = vpack.c.b16 %v388, %v384
    %v453 = vpack.c.b16 %v389, %v385
    %v454 = vpack.c.b16 %v390, %v386
    %v455 = vpack.c.b16 %v391, %v387
    %520 = vmatpush.bf16.msra.mxu0 %v420
    %521 = vmatpush.bf16.msra.mxu0 %v416
    %522 = vmatpush.bf16.msra.mxu0 %v412
    %523 = vmatpush.bf16.msra.mxu0 %v408
    %524 = vmatpush.bf16.msra.mxu0 %v404
    %525 = vmatpush.bf16.msra.mxu0 %v400
    %526 = vmatpush.bf16.msra.mxu0 %v396
    %527 = vmatpush.bf16.msra.mxu0 %v392
    %528 = vmatmul.bf16.gmra.mxu0 %v134
    %v529 = vpop.f32.mrf.mxu0
    %v530 = vadd.f32 0.0, %v529
    %v531 = vpop.f32.mrf.mxu0
    %532 = vdwg.mxu0
    %533 = vmatpush.bf16.msra.mxu0 %v452
    %534 = vmatpush.bf16.msra.mxu0 %v448
    %535 = vmatpush.bf16.msra.mxu0 %v444
    %536 = vmatpush.bf16.msra.mxu0 %v440
    %537 = vmatpush.bf16.msra.mxu0 %v436
    %538 = vmatpush.bf16.msra.mxu0 %v432
    %539 = vmatpush.bf16.msra.mxu0 %v428
    %540 = vmatpush.bf16.msra.mxu0 %v424
    %541 = vmatmul.bf16.gmra.mxu0 %v135
    %v542 = vpop.f32.mrf.mxu0
    %v543 = vadd.f32 %v530, %v542
    %v544 = vpop.f32.mrf.mxu0
    %545 = vdwg.mxu0
    %546 = vmatpush.bf16.msra.mxu0 %v421
    %547 = vmatpush.bf16.msra.mxu0 %v417
    %548 = vmatpush.bf16.msra.mxu0 %v413
    %549 = vmatpush.bf16.msra.mxu0 %v409
    %550 = vmatpush.bf16.msra.mxu0 %v405
    %551 = vmatpush.bf16.msra.mxu0 %v401
    %552 = vmatpush.bf16.msra.mxu0 %v397
    %553 = vmatpush.bf16.msra.mxu0 %v393
    %554 = vmatmul.bf16.gmra.mxu0 %v134
    %v555 = vpop.f32.mrf.mxu0
    %v556 = vadd.f32 0.0, %v555
    %v557 = vpop.f32.mrf.mxu0
    %558 = vdwg.mxu0
    %559 = vmatpush.bf16.msra.mxu0 %v453
    %560 = vmatpush.bf16.msra.mxu0 %v449
    %561 = vmatpush.bf16.msra.mxu0 %v445
    %562 = vmatpush.bf16.msra.mxu0 %v441
    %563 = vmatpush.bf16.msra.mxu0 %v437
    %564 = vmatpush.bf16.msra.mxu0 %v433
    %565 = vmatpush.bf16.msra.mxu0 %v429
    %566 = vmatpush.bf16.msra.mxu0 %v425
    %567 = vmatmul.bf16.gmra.mxu0 %v135
    %v568 = vpop.f32.mrf.mxu0
    %v569 = vadd.f32 %v556, %v568
    %v570 = vpop.f32.mrf.mxu0
    %571 = vdwg.mxu0
    %572 = vmatpush.bf16.msra.mxu0 %v422
    %573 = vmatpush.bf16.msra.mxu0 %v418
    %574 = vmatpush.bf16.msra.mxu0 %v414
    %575 = vmatpush.bf16.msra.mxu0 %v410
    %576 = vmatpush.bf16.msra.mxu0 %v406
    %577 = vmatpush.bf16.msra.mxu0 %v402
    %578 = vmatpush.bf16.msra.mxu0 %v398
    %579 = vmatpush.bf16.msra.mxu0 %v394
    %580 = vmatmul.bf16.gmra.mxu0 %v134
    %v581 = vpop.f32.mrf.mxu0
    %v582 = vadd.f32 0.0, %v581
    %v583 = vpop.f32.mrf.mxu0
    %584 = vdwg.mxu0
    %585 = vmatpush.bf16.msra.mxu0 %v454
    %586 = vmatpush.bf16.msra.mxu0 %v450
    %587 = vmatpush.bf16.msra.mxu0 %v446
    %588 = vmatpush.bf16.msra.mxu0 %v442
    %589 = vmatpush.bf16.msra.mxu0 %v438
    %590 = vmatpush.bf16.msra.mxu0 %v434
    %591 = vmatpush.bf16.msra.mxu0 %v430
    %592 = vmatpush.bf16.msra.mxu0 %v426
    %593 = vmatmul.bf16.gmra.mxu0 %v135
    %v594 = vpop.f32.mrf.mxu0
    %v595 = vadd.f32 %v582, %v594
    %v596 = vpop.f32.mrf.mxu0
    %597 = vdwg.mxu0
    %598 = vmatpush.bf16.msra.mxu0 %v423
    %599 = vmatpush.bf16.msra.mxu0 %v419
    %600 = vmatpush.bf16.msra.mxu0 %v415
    %601 = vmatpush.bf16.msra.mxu0 %v411
    %602 = vmatpush.bf16.msra.mxu0 %v407
    %603 = vmatpush.bf16.msra.mxu0 %v403
    %604 = vmatpush.bf16.msra.mxu0 %v399
    %605 = vmatpush.bf16.msra.mxu0 %v395
    %606 = vmatmul.bf16.gmra.mxu0 %v134
    %v607 = vpop.f32.mrf.mxu0
    %v608 = vadd.f32 0.0, %v607
    %v609 = vpop.f32.mrf.mxu0
    %610 = vdwg.mxu0
    %611 = vmatpush.bf16.msra.mxu0 %v455
    %612 = vmatpush.bf16.msra.mxu0 %v451
    %613 = vmatpush.bf16.msra.mxu0 %v447
    %614 = vmatpush.bf16.msra.mxu0 %v443
    %615 = vmatpush.bf16.msra.mxu0 %v439
    %616 = vmatpush.bf16.msra.mxu0 %v435
    %617 = vmatpush.bf16.msra.mxu0 %v431
    %618 = vmatpush.bf16.msra.mxu0 %v427
    %619 = vmatmul.bf16.gmra.mxu0 %v135
    %v620 = vpop.f32.mrf.mxu0
    %v621 = vadd.f32 %v608, %v620
    %v622 = vpop.f32.mrf.mxu0
    %623 = vdwg.mxu0
    %v624 = vxor.u32 %v543, 2147483648
    %v625 = vxor.u32 %v569, 2147483648
    %v626 = vmul.f32 %v624, 1.442695
    %v627 = vpow.pop %v626
    %v628 = vmul.f32 %v625, 1.442695
    %v629 = vpow.pop %v628
    %v630 = vadd.f32 %v627, 1.0
    %v631 = vadd.f32 %v629, 1.0
    %v632 = vrcp.pop %v630
    %v633 = vmul.f32 %v630, %v632
    %v634 = vsub.f32 1.0, %v633
    %v635 = vmul.f32 %v632, %v634
    %v636 = vadd.f32 %v632, %v635
    %vm637 = vweird.f32 %v630
    %vm638 = vweird.f32 %v632
    %vm639 = vmor %vm637, %vm638
    %v640 = vsel %vm639, %v632, %v636
    %v641 = vand.u32 2147483647, %v630
    %vm642 = vcmp.eq.f32.partialorder %v641, 8.507059e+37
    %v643 = vand.u32 %v630, 2147483648
    %v644 = vor.u32 1.1754944e-38, %v643
    %v645 = vsel %vm642, %v644, %v640
    %v646 = vmul.f32 1.0, %v645
    %v647 = vrcp.pop %v631
    %v648 = vmul.f32 %v631, %v647
    %v649 = vsub.f32 1.0, %v648
    %v650 = vmul.f32 %v647, %v649
    %v651 = vadd.f32 %v647, %v650
    %vm652 = vweird.f32 %v631
    %vm653 = vweird.f32 %v647
    %vm654 = vmor %vm652, %vm653
    %v655 = vsel %vm654, %v647, %v651
    %v656 = vand.u32 2147483647, %v631
    %vm657 = vcmp.eq.f32.partialorder %v656, 8.507059e+37
    %v658 = vand.u32 %v631, 2147483648
    %v659 = vor.u32 1.1754944e-38, %v658
    %v660 = vsel %vm657, %v659, %v655
    %v661 = vmul.f32 1.0, %v660
    %v662 = vtanh.pop %v595
    %v663 = vtanh.pop %v621
    %v664 = vsub.f32 1.0, %v646
    %v665 = vsub.f32 1.0, %v661
    %v666 = vmul.f32 %v664, %v662
    %v667 = vmul.f32 %v665, %v663
    %v668 = vpack.c.bf16 %v666, %v666
    %v669 = vpack.c.bf16 %v667, %v667
    %v670 = vld [vmem:[#allocation8] sm:$0xf]
    %v671 = vld [vmem:[#allocation8 + $0x4] sm:$0xf]
    %v672 = vld [vmem:[#allocation8 + $0x8] sm:$0xf]
    %v673 = vld [vmem:[#allocation8 + $0xc] sm:$0xf]
    %v674 = vld [vmem:[#allocation8 + $0x10] sm:$0xf]
    %v675 = vld [vmem:[#allocation8 + $0x14] sm:$0xf]
    %v676 = vld [vmem:[#allocation8 + $0x18] sm:$0xf]
    %v677 = vld [vmem:[#allocation8 + $0x1c] sm:$0xf]
    %v678 = vld [vmem:[#allocation8 + $0x20] sm:$0xf]
    %v679 = vld [vmem:[#allocation8 + $0x24] sm:$0xf]
    %v680 = vld [vmem:[#allocation8 + $0x28] sm:$0xf]
    %v681 = vld [vmem:[#allocation8 + $0x2c] sm:$0xf]
    %v682 = vld [vmem:[#allocation8 + $0x30] sm:$0xf]
    %v683 = vld [vmem:[#allocation8 + $0x34] sm:$0xf]
    %v684 = vld [vmem:[#allocation8 + $0x38] sm:$0xf]
    %v685 = vld [vmem:[#allocation8 + $0x3c] sm:$0xf]
    %v686 = vld [vmem:[#allocation8 + $0x40] sm:$0xf]
    %v687 = vld [vmem:[#allocation8 + $0x44] sm:$0xf]
    %v688 = vld [vmem:[#allocation8 + $0x48] sm:$0xf]
    %v689 = vld [vmem:[#allocation8 + $0x4c] sm:$0xf]
    %v690 = vld [vmem:[#allocation8 + $0x50] sm:$0xf]
    %v691 = vld [vmem:[#allocation8 + $0x54] sm:$0xf]
    %v692 = vld [vmem:[#allocation8 + $0x58] sm:$0xf]
    %v693 = vld [vmem:[#allocation8 + $0x5c] sm:$0xf]
    %v694 = vld [vmem:[#allocation8 + $0x60] sm:$0xf]
    %v695 = vld [vmem:[#allocation8 + $0x64] sm:$0xf]
    %v696 = vld [vmem:[#allocation8 + $0x68] sm:$0xf]
    %v697 = vld [vmem:[#allocation8 + $0x6c] sm:$0xf]
    %v698 = vld [vmem:[#allocation8 + $0x70] sm:$0xf]
    %v699 = vld [vmem:[#allocation8 + $0x74] sm:$0xf]
    %v700 = vld [vmem:[#allocation8 + $0x78] sm:$0xf]
    %v701 = vld [vmem:[#allocation8 + $0x7c] sm:$0xf]
    %v734 = vunpack.c.l.b16 %v670
    %v735 = vunpack.c.l.b16 %v671
    %v736 = vunpack.c.l.b16 %v672
    %v737 = vunpack.c.l.b16 %v673
    %v738 = vunpack.c.l.b16 %v674
    %v739 = vunpack.c.l.b16 %v675
    %v740 = vunpack.c.l.b16 %v676
    %v741 = vunpack.c.l.b16 %v677
    %v742 = vunpack.c.l.b16 %v678
    %v743 = vunpack.c.l.b16 %v679
    %v744 = vunpack.c.l.b16 %v680
    %v745 = vunpack.c.l.b16 %v681
    %v746 = vunpack.c.l.b16 %v682
    %v747 = vunpack.c.l.b16 %v683
    %v748 = vunpack.c.l.b16 %v684
    %v749 = vunpack.c.l.b16 %v685
    %v750 = vunpack.c.l.b16 %v686
    %v751 = vunpack.c.l.b16 %v687
    %v752 = vunpack.c.l.b16 %v688
    %v753 = vunpack.c.l.b16 %v689
    %v754 = vunpack.c.l.b16 %v690
    %v755 = vunpack.c.l.b16 %v691
    %v756 = vunpack.c.l.b16 %v692
    %v757 = vunpack.c.l.b16 %v693
    %v758 = vunpack.c.l.b16 %v694
    %v759 = vunpack.c.l.b16 %v695
    %v760 = vunpack.c.l.b16 %v696
    %v761 = vunpack.c.l.b16 %v697
    %v762 = vunpack.c.l.b16 %v698
    %v763 = vunpack.c.l.b16 %v699
    %v764 = vunpack.c.l.b16 %v700
    %v765 = vunpack.c.l.b16 %v701
    %v766 = vpack.c.b16 %v735, %v734
    %v767 = vpack.c.b16 %v737, %v736
    %v768 = vpack.c.b16 %v739, %v738
    %v769 = vpack.c.b16 %v741, %v740
    %v770 = vpack.c.b16 %v743, %v742
    %v771 = vpack.c.b16 %v745, %v744
    %v772 = vpack.c.b16 %v747, %v746
    %v773 = vpack.c.b16 %v749, %v748
    %v774 = vpack.c.b16 %v751, %v750
    %v775 = vpack.c.b16 %v753, %v752
    %v776 = vpack.c.b16 %v755, %v754
    %v777 = vpack.c.b16 %v757, %v756
    %v778 = vpack.c.b16 %v759, %v758
    %v779 = vpack.c.b16 %v761, %v760
    %v780 = vpack.c.b16 %v763, %v762
    %v781 = vpack.c.b16 %v765, %v764
    %798 = vmatpush.bf16.msra.mxu0 %v773
    %799 = vmatpush.bf16.msra.mxu0 %v772
    %800 = vmatpush.bf16.msra.mxu0 %v771
    %801 = vmatpush.bf16.msra.mxu0 %v770
    %802 = vmatpush.bf16.msra.mxu0 %v769
    %803 = vmatpush.bf16.msra.mxu0 %v768
    %804 = vmatpush.bf16.msra.mxu0 %v767
    %805 = vmatpush.bf16.msra.mxu0 %v766
    %806 = vmatmul.bf16.gmra.mxu0 %v668
    %v807 = vpop.f32.mrf.mxu0
    %v808 = vadd.f32 0.0, %v807
    %v809 = vpop.f32.mrf.mxu0
    %810 = vdwg.mxu0
    %811 = vmatpush.bf16.msra.mxu0 %v781
    %812 = vmatpush.bf16.msra.mxu0 %v780
    %813 = vmatpush.bf16.msra.mxu0 %v779
    %814 = vmatpush.bf16.msra.mxu0 %v778
    %815 = vmatpush.bf16.msra.mxu0 %v777
    %816 = vmatpush.bf16.msra.mxu0 %v776
    %817 = vmatpush.bf16.msra.mxu0 %v775
    %818 = vmatpush.bf16.msra.mxu0 %v774
    %819 = vmatmul.bf16.gmra.mxu0 %v669
    %v820 = vpop.f32.mrf.mxu0
    %v821 = vadd.f32 %v808, %v820
    %v822 = vpop.f32.mrf.mxu0
    %823 = vdwg.mxu0
    %824 = vst [vmem:[#allocation10] sm:$0xff] %v821
    // Predicated region
    $region34: #{tpu_custom_call.1} parent=1 // pred_check
      _
    $region35: #{tpu_custom_call.1} parent=1 // pred_check_branch
      %826 = sbr.rel (0) target = $region37
    $region36: #{tpu_custom_call.1} parent=1 // pred_region
      %828 = vsyncadd [#allocation4], 0
      %s830 = sshll.u32 [#allocation10], 4
      %s831 = int_to_ptr.vmem [resolvable:$true] %s830
      %s832 = sshll.u32 %s4, 4
      %s833 = int_to_ptr.hbm [resolvable:$true] %s832
      %835 = dma.vmem_to_hbm [thread:$0]  %s831, 128, %s833, [#allocation4]
    $region37: #{tpu_custom_call.1} parent=1 // pred_fallthru
      _
    // Predicated region
    $region38: #{tpu_custom_call.1} parent=1 // pred_check
      _
    $region39: #{tpu_custom_call.1} parent=1 // pred_check_branch
      %837 = sbr.rel (0) target = $region41
    $region40: #{tpu_custom_call.1} parent=1 // pred_region
      %839 = dma.done [#allocation4], 128
    $region41: #{tpu_custom_call.1} parent=1 // pred_fallthru
      _
    %840 = vsyncpa [#allocation3], 1
    %841 = vsyncpa [#allocation6], 1
    %842 = vsyncpa [#allocation9], 1
    %843 = vsyncpa [#allocation4], 1

</llo_original>
